<compile_context>
chip_gen: v7x
topology: tpu7x:2x2x1
jax: 0.10.0
libtpu: 0.0.40
codegen_flags: <defaults>
</compile_context>

<pallas_src>
import jax
import jax.numpy as jnp
from jax.experimental import pallas as pl
from jax.experimental.pallas import tpu as pltpu


def _round_up(n, m):
    return ((n + m - 1) // m) * m


def _cdiv(a, b):
    return (a + b - 1) // b


def _vmem_limit_bytes():
    """Generation-aware scoped-VMEM limit: ~3/4 of physical capacity
    (v7x: 64 MiB/TC -> 48 MiB; v5e/v6e: 128 MiB -> 96 MiB)."""
    cap = 64 * 1024 * 1024  # conservative fallback = v7x per-TC VMEM
    try:
        cap = pltpu.get_tpu_info().vmem_capacity_bytes
    except Exception:
        pass
    return int(min(cap * 3 // 4, 112 * 1024 * 1024))


def _make_kernel(out_dim, out_padded):
    """out_dim: real (unpadded) #classes; out_padded: lane-padded width."""

    def kernel(x_ref, w1_ref, b1_ref, w2_ref, b2_ref, w3_ref, b3_ref, o_ref):
        # fc1 + ReLU (dropout = identity at inference). bf16 MXU operands with
        # f32 accumulation; ReLU output materialized directly in bf16.
        x = x_ref[...].astype(jnp.bfloat16)
        h1 = jnp.dot(x, w1_ref[...], preferred_element_type=jnp.float32)
        h1 = jnp.maximum(h1 + b1_ref[...], 0.0).astype(jnp.bfloat16)

        # fc2 + ReLU
        h2 = jnp.dot(h1, w2_ref[...], preferred_element_type=jnp.float32)
        h2 = jnp.maximum(h2 + b2_ref[...], 0.0).astype(jnp.bfloat16)

        # fc3 (output columns lane-padded to a multiple of 128)
        logits = jnp.dot(h2, w3_ref[...], preferred_element_type=jnp.float32)
        logits = logits + b3_ref[...]

        # Numerically stable softmax over dim=1; padded columns masked to a
        # large negative so exp() underflows to exactly 0 for them.
        if out_dim < out_padded:
            col = jax.lax.broadcasted_iota(jnp.int32, logits.shape, 1)
            logits = jnp.where(col < out_dim, logits, -1e30)
        m = jnp.max(logits, axis=1, keepdims=True)
        e = jnp.exp(logits - m)
        denom = jnp.sum(e, axis=1, keepdims=True)
        # Exact division (NOT pl.reciprocal(approx=True)) so every row sums to
        # 1 to f32 precision before the bf16 output cast.
        o_ref[...] = (e / denom).astype(o_ref.dtype)

    return kernel


def discriminator_forward(x, params, *, max_tile_rows=1024):
    """x: (B, input_dim) float32. params: dict of w1,b1,w2,b2,w3,b3.

    Weights are stored (in_features, out_features), so y = x @ W + b matches
    PyTorch's x @ W.T + b with W of shape (out, in). Returns f32 (B, out_dim).
    """
    w1, b1 = params["w1"], params["b1"]
    w2, b2 = params["w2"], params["b2"]
    w3, b3 = params["w3"], params["b3"]
    B, in_dim = x.shape
    hid = w1.shape[1]
    out_dim = w3.shape[1]

    # Module default output_dim=1: softmax over a single column is exactly 1.0
    # independent of x -> skip fc1/fc2/fc3 and the softmax entirely.
    if out_dim == 1:
        return jnp.ones((B, 1), jnp.float32)

    HID = _round_up(hid, 128)
    OUT = _round_up(out_dim, 128)

    # Batch tiling: choose #grid steps first, then size TB so the last tile is
    # not mostly padding. For big batches force an even number (>=2) of steps
    # so v7x's two TensorCores both get work (TB stays >= 256 when B >= 512).
    n_steps = max(1, _cdiv(B, max_tile_rows))
    if B >= 512:
        n_steps = max(n_steps, 2)
        if n_steps % 2:
            n_steps += 1
    TB = _round_up(_cdiv(B, n_steps), 16)  # multiple of 16 (bf16 sublanes)
    Bp = TB * n_steps

    # x stays f32 and feature-unpadded (block = full last dim). Only a ragged
    # batch tail gets zero-padded, so no extra pad+cast pass over x in HBM.
    xp = x if Bp == B else jnp.pad(x, ((0, Bp - B), (0, 0)))

    def pad2(a, rows, cols, dtype):
        a = a.astype(dtype)
        return jnp.pad(a, ((0, rows - a.shape[0]), (0, cols - a.shape[1])))

    w1p = pad2(w1, in_dim, HID, jnp.bfloat16)
    w2p = pad2(w2, HID, HID, jnp.bfloat16)
    w3p = pad2(w3, HID, OUT, jnp.bfloat16)
    b1p = pad2(b1, 1, HID, jnp.float32)
    b2p = pad2(b2, 1, HID, jnp.float32)
    b3p = pad2(b3, 1, OUT, jnp.float32)

    kernel = _make_kernel(out_dim, OUT)
    resident = lambda i: (0, 0)  # grid-invariant: weights stay VMEM-resident

    def call(single_buffer_weights):
        # Weights never change across grid steps -> 1 VMEM buffer is enough.
        wmode = (
            {"pipeline_mode": pl.Buffered(1)} if single_buffer_weights else {}
        )
        return pl.pallas_call(
            kernel,
            out_shape=jax.ShapeDtypeStruct((Bp, OUT), jnp.bfloat16),
            grid=(n_steps,),
            in_specs=[
                pl.BlockSpec((TB, in_dim), lambda i: (i, 0)),   # x tile (pipelined)
                pl.BlockSpec((in_dim, HID), resident, **wmode),  # w1
                pl.BlockSpec((1, HID), resident, **wmode),       # b1
                pl.BlockSpec((HID, HID), resident, **wmode),     # w2
                pl.BlockSpec((1, HID), resident, **wmode),       # b2
                pl.BlockSpec((HID, OUT), resident, **wmode),     # w3
                pl.BlockSpec((1, OUT), resident, **wmode),       # b3
            ],
            out_specs=pl.BlockSpec((TB, OUT), lambda i: (i, 0)),
            compiler_params=pltpu.CompilerParams(
                dimension_semantics=("parallel",),  # megacore batch sharding
                vmem_limit_bytes=_vmem_limit_bytes(),
            ),
        )(xp, w1p, b1p, w2p, b2p, w3p, b3p)

    try:
        out = call(True)
    except Exception:
        # Older jax may not accept pipeline_mode=pl.Buffered(1); fall back to
        # default double-buffered resident weights.
        out = call(False)

    return out[:B, :out_dim].astype(jnp.float32)


def init_params(key, input_dim, hidden_dim, output_dim=1):
    """Deterministic init mirroring PyTorch nn.Linear default
    (uniform(-1/sqrt(fan_in), 1/sqrt(fan_in)))."""
    ks = jax.random.split(key, 6)

    def linear(kw, kb, fan_in, fan_out):
        bound = 1.0 / (fan_in ** 0.5)
        w = jax.random.uniform(kw, (fan_in, fan_out), jnp.float32, -bound, bound)
        b = jax.random.uniform(kb, (1, fan_out), jnp.float32, -bound, bound)
        return w, b

    w1, b1 = linear(ks[0], ks[1], input_dim, hidden_dim)
    w2, b2 = linear(ks[2], ks[3], hidden_dim, hidden_dim)
    w3, b3 = linear(ks[4], ks[5], hidden_dim, output_dim)
    return {"w1": w1, "b1": b1, "w2": w2, "b2": b2, "w3": w3, "b3": b3}


def _reference_forward(x, p):
    """Plain-JAX f32 reference of the (eval-mode) PyTorch forward."""
    h1 = jnp.maximum(x @ p["w1"] + p["b1"], 0.0)
    h2 = jnp.maximum(h1 @ p["w2"] + p["b2"], 0.0)
    logits = h2 @ p["w3"] + p["b3"]
    return jax.nn.softmax(logits, axis=1)


if __name__ == "__main__":
    key = jax.random.PRNGKey(0)
    k_x, k_p, k_x2, k_p2, k_x3, k_p3 = jax.random.split(key, 6)

    input_dim, hidden_dim = 16, 32

    # Case 1: module defaults (output_dim=1) -> softmax over one column == 1.0
    # (handled by the wrapper short-circuit).
    B1 = 8
    x1 = jax.random.normal(k_x, (B1, input_dim), jnp.float32)
    p1 = init_params(k_p, input_dim, hidden_dim, 1)
    out1 = jax.block_until_ready(discriminator_forward(x1, p1))
    ref1 = _reference_forward(x1, p1)
    assert out1.shape == (B1, 1)
    assert jnp.allclose(out1, ref1, atol=1e-6), "mismatch vs reference (out_dim=1)"

    # Case 2: ragged batch + multi-class output -> Pallas kernel path with
    # lane-padded/masked softmax (bf16 matmuls + bf16 output store -> looser
    # tolerances).
    B2, out_dim2 = 37, 4
    x2 = jax.random.normal(k_x2, (B2, input_dim), jnp.float32)
    p2 = init_params(k_p2, input_dim, hidden_dim, out_dim2)
    out2 = jax.block_until_ready(discriminator_forward(x2, p2))
    ref2 = _reference_forward(x2, p2)
    assert out2.shape == (B2, out_dim2)
    assert jnp.allclose(out2, ref2, atol=3e-2), "mismatch vs reference (out_dim=4)"
    assert jnp.allclose(jnp.sum(out2, axis=1), 1.0, atol=1e-2), "softmax not normalized"

    # Case 3: multi-step grid (small max_tile_rows forces 3 batch tiles) to
    # exercise the pipelined x/out tiling and ragged-tail padding.
    B3, out_dim3 = 300, 3
    x3 = jax.random.normal(k_x3, (B3, input_dim), jnp.float32)
    p3 = init_params(k_p3, input_dim, hidden_dim, out_dim3)
    out3 = jax.block_until_ready(
        discriminator_forward(x3, p3, max_tile_rows=128))
    ref3 = _reference_forward(x3, p3)
    assert out3.shape == (B3, out_dim3)
    assert jnp.allclose(out3, ref3, atol=3e-2), "mismatch vs reference (multi-tile)"
    assert jnp.allclose(jnp.sum(out3, axis=1), 1.0, atol=1e-2), "softmax not normalized (multi-tile)"

    print("KERNEL_OK")
</pallas_src>

<mosaic_0001>
module attributes {stable_mosaic.version = 11 : i64} {
  func.func @kernel(%arg0: i32, %arg1: memref<48x16xf32, #tpu.memory_space<vmem>>, %arg2: memref<16x128xbf16, #tpu.memory_space<vmem>>, %arg3: memref<1x128xf32, #tpu.memory_space<vmem>>, %arg4: memref<128x128xbf16, #tpu.memory_space<vmem>>, %arg5: memref<1x128xf32, #tpu.memory_space<vmem>>, %arg6: memref<128x128xbf16, #tpu.memory_space<vmem>>, %arg7: memref<1x128xf32, #tpu.memory_space<vmem>>, %arg8: memref<48x128xbf16, #tpu.memory_space<vmem>>) attributes {dimension_semantics = [#tpu.dimension_semantics<parallel>], iteration_bounds = array<i64: 1>, scalar_prefetch = 0 : i64, scratch_operands = 0 : i64, tpu.core_type = #tpu.core_type<tc>, window_params = [{transform_indices = @transform_0, window_bounds = array<i64: 48, 16>}, {pipeline_mode = #tpu.pipeline_mode<synchronous>, transform_indices = @transform_1, window_bounds = array<i64: 16, 128>}, {pipeline_mode = #tpu.pipeline_mode<synchronous>, transform_indices = @transform_2, window_bounds = array<i64: 1, 128>}, {pipeline_mode = #tpu.pipeline_mode<synchronous>, transform_indices = @transform_3, window_bounds = array<i64: 128, 128>}, {pipeline_mode = #tpu.pipeline_mode<synchronous>, transform_indices = @transform_4, window_bounds = array<i64: 1, 128>}, {pipeline_mode = #tpu.pipeline_mode<synchronous>, transform_indices = @transform_5, window_bounds = array<i64: 128, 128>}, {pipeline_mode = #tpu.pipeline_mode<synchronous>, transform_indices = @transform_6, window_bounds = array<i64: 1, 128>}, {transform_indices = @transform_7, window_bounds = array<i64: 48, 128>}]} {
    %c0 = arith.constant 0 : index
    %c0_0 = arith.constant 0 : index
    %0 = vector.load %arg1[%c0, %c0_0] : memref<48x16xf32, #tpu.memory_space<vmem>>, vector<48x16xf32>
    %1 = arith.truncf %0 : vector<48x16xf32> to vector<48x16xbf16>
    %c0_1 = arith.constant 0 : index
    %c0_2 = arith.constant 0 : index
    %2 = vector.load %arg2[%c0_1, %c0_2] : memref<16x128xbf16, #tpu.memory_space<vmem>>, vector<16x128xbf16>
    %cst = arith.constant dense<0.000000e+00> : vector<48x128xf32>
    %3 = tpu.matmul %1, %2, %cst {dimension_numbers = #tpu.dot_dimension_numbers<[1], [0], [0], [1], [0, 0, 1, 1], [], []>} : vector<48x16xbf16>, vector<16x128xbf16>, vector<48x128xf32> -> vector<48x128xf32>
    %c0_3 = arith.constant 0 : index
    %c0_4 = arith.constant 0 : index
    %4 = vector.load %arg3[%c0_3, %c0_4] : memref<1x128xf32, #tpu.memory_space<vmem>>, vector<1x128xf32>
    %5 = vector.broadcast %4 : vector<1x128xf32> to vector<48x128xf32>
    %6 = arith.addf %3, %5 : vector<48x128xf32>
    %cst_5 = arith.constant 0.000000e+00 : f32
    %7 = vector.broadcast %cst_5 : f32 to vector<48x128xf32>
    %8 = arith.maximumf %6, %7 : vector<48x128xf32>
    %9 = arith.truncf %8 : vector<48x128xf32> to vector<48x128xbf16>
    %c0_6 = arith.constant 0 : index
    %c0_7 = arith.constant 0 : index
    %10 = vector.load %arg4[%c0_6, %c0_7] : memref<128x128xbf16, #tpu.memory_space<vmem>>, vector<128x128xbf16>
    %cst_8 = arith.constant dense<0.000000e+00> : vector<48x128xf32>
    %11 = tpu.matmul %9, %10, %cst_8 {dimension_numbers = #tpu.dot_dimension_numbers<[1], [0], [0], [1], [0, 0, 1, 1], [], []>} : vector<48x128xbf16>, vector<128x128xbf16>, vector<48x128xf32> -> vector<48x128xf32>
    %c0_9 = arith.constant 0 : index
    %c0_10 = arith.constant 0 : index
    %12 = vector.load %arg5[%c0_9, %c0_10] : memref<1x128xf32, #tpu.memory_space<vmem>>, vector<1x128xf32>
    %13 = vector.broadcast %12 : vector<1x128xf32> to vector<48x128xf32>
    %14 = arith.addf %11, %13 : vector<48x128xf32>
    %cst_11 = arith.constant 0.000000e+00 : f32
    %15 = vector.broadcast %cst_11 : f32 to vector<48x128xf32>
    %16 = arith.maximumf %14, %15 : vector<48x128xf32>
    %17 = arith.truncf %16 : vector<48x128xf32> to vector<48x128xbf16>
    %c0_12 = arith.constant 0 : index
    %c0_13 = arith.constant 0 : index
    %18 = vector.load %arg6[%c0_12, %c0_13] : memref<128x128xbf16, #tpu.memory_space<vmem>>, vector<128x128xbf16>
    %cst_14 = arith.constant dense<0.000000e+00> : vector<48x128xf32>
    %19 = tpu.matmul %17, %18, %cst_14 {dimension_numbers = #tpu.dot_dimension_numbers<[1], [0], [0], [1], [0, 0, 1, 1], [], []>} : vector<48x128xbf16>, vector<128x128xbf16>, vector<48x128xf32> -> vector<48x128xf32>
    %c0_15 = arith.constant 0 : index
    %c0_16 = arith.constant 0 : index
    %20 = vector.load %arg7[%c0_15, %c0_16] : memref<1x128xf32, #tpu.memory_space<vmem>>, vector<1x128xf32>
    %21 = vector.broadcast %20 : vector<1x128xf32> to vector<48x128xf32>
    %22 = arith.addf %19, %21 : vector<48x128xf32>
    %23 = tpu.iota {dimensions = array<i32: 1>} : vector<48x128xi32>
    %c4_i32 = arith.constant 4 : i32
    %24 = vector.broadcast %c4_i32 : i32 to vector<48x128xi32>
    %25 = arith.cmpi slt, %23, %24 : vector<48x128xi32>
    %cst_17 = arith.constant -1.000000e+30 : f32
    %26 = vector.broadcast %cst_17 : f32 to vector<48x128xf32>
    %27 = arith.select %25, %22, %26 : vector<48x128xi1>, vector<48x128xf32>
    %cst_18 = arith.constant dense<0xFF800000> : vector<48xf32>
    %28 = vector.multi_reduction <maximumf>, %27, %cst_18 [1] : vector<48x128xf32> to vector<48xf32>
    %29 = vector.shape_cast %28 : vector<48xf32> to vector<48x1xf32>
    %30 = vector.broadcast %29 : vector<48x1xf32> to vector<48x128xf32>
    %31 = arith.subf %27, %30 : vector<48x128xf32>
    %32 = math.exp %31 : vector<48x128xf32>
    %cst_19 = arith.constant dense<0.000000e+00> : vector<48xf32>
    %33 = vector.multi_reduction <add>, %32, %cst_19 [1] : vector<48x128xf32> to vector<48xf32>
    %34 = vector.shape_cast %33 : vector<48xf32> to vector<48x1xf32>
    %35 = vector.broadcast %34 : vector<48x1xf32> to vector<48x128xf32>
    %36 = arith.divf %32, %35 : vector<48x128xf32>
    %37 = arith.truncf %36 : vector<48x128xf32> to vector<48x128xbf16>
    %c0_20 = arith.constant 0 : index
    %c0_21 = arith.constant 0 : index
    %38 = vector.load %arg8[%c0_20, %c0_21] : memref<48x128xbf16, #tpu.memory_space<vmem>>, vector<48x128xbf16>
    tpu.vector_store %arg8[%c0_20, %c0_21], %37 {strides = array<i32>} : memref<48x128xbf16, #tpu.memory_space<vmem>>, vector<48x128xbf16>,
    return
  }
  func.func @transform_0(%arg0: i32) -> (i32, i32) {
    %c0_i32 = arith.constant 0 : i32
    %c0_i32_0 = arith.constant 0 : i32
    return %arg0, %c0_i32 : i32, i32
  }
  func.func @transform_1(%arg0: i32) -> (i32, i32) {
    %c0_i32 = arith.constant 0 : i32
    %c0_i32_0 = arith.constant 0 : i32
    %c0_i32_1 = arith.constant 0 : i32
    return %c0_i32, %c0_i32_0 : i32, i32
  }
  func.func @transform_2(%arg0: i32) -> (i32, i32) {
    %c0_i32 = arith.constant 0 : i32
    %c0_i32_0 = arith.constant 0 : i32
    %c0_i32_1 = arith.constant 0 : i32
    return %c0_i32, %c0_i32_0 : i32, i32
  }
  func.func @transform_3(%arg0: i32) -> (i32, i32) {
    %c0_i32 = arith.constant 0 : i32
    %c0_i32_0 = arith.constant 0 : i32
    %c0_i32_1 = arith.constant 0 : i32
    return %c0_i32, %c0_i32_0 : i32, i32
  }
  func.func @transform_4(%arg0: i32) -> (i32, i32) {
    %c0_i32 = arith.constant 0 : i32
    %c0_i32_0 = arith.constant 0 : i32
    %c0_i32_1 = arith.constant 0 : i32
    return %c0_i32, %c0_i32_0 : i32, i32
  }
  func.func @transform_5(%arg0: i32) -> (i32, i32) {
    %c0_i32 = arith.constant 0 : i32
    %c0_i32_0 = arith.constant 0 : i32
    %c0_i32_1 = arith.constant 0 : i32
    return %c0_i32, %c0_i32_0 : i32, i32
  }
  func.func @transform_6(%arg0: i32) -> (i32, i32) {
    %c0_i32 = arith.constant 0 : i32
    %c0_i32_0 = arith.constant 0 : i32
    %c0_i32_1 = arith.constant 0 : i32
    return %c0_i32, %c0_i32_0 : i32, i32
  }
  func.func @transform_7(%arg0: i32) -> (i32, i32) {
    %c0_i32 = arith.constant 0 : i32
    %c0_i32_0 = arith.constant 0 : i32
    return %arg0, %c0_i32 : i32, i32
  }
}

module attributes {stable_mosaic.version = 11 : i64} {
  func.func @kernel(%arg0: i32, %arg1: memref<48x16xf32, #tpu.memory_space<vmem>>, %arg2: memref<16x128xbf16, #tpu.memory_space<vmem>>, %arg3: memref<1x128xf32, #tpu.memory_space<vmem>>, %arg4: memref<128x128xbf16, #tpu.memory_space<vmem>>, %arg5: memref<1x128xf32, #tpu.memory_space<vmem>>, %arg6: memref<128x128xbf16, #tpu.memory_space<vmem>>, %arg7: memref<1x128xf32, #tpu.memory_space<vmem>>, %arg8: memref<48x128xbf16, #tpu.memory_space<vmem>>) attributes {dimension_semantics = [#tpu.dimension_semantics<parallel>], iteration_bounds = array<i64: 1>, scalar_prefetch = 0 : i64, scratch_operands = 0 : i64, tpu.core_type = #tpu.core_type<tc>, window_params = [{transform_indices = @transform_0, window_bounds = array<i64: 48, 16>}, {pipeline_mode = #tpu.pipeline_mode<synchronous>, transform_indices = @transform_1, window_bounds = array<i64: 16, 128>}, {pipeline_mode = #tpu.pipeline_mode<synchronous>, transform_indices = @transform_2, window_bounds = array<i64: 1, 128>}, {pipeline_mode = #tpu.pipeline_mode<synchronous>, transform_indices = @transform_3, window_bounds = array<i64: 128, 128>}, {pipeline_mode = #tpu.pipeline_mode<synchronous>, transform_indices = @transform_4, window_bounds = array<i64: 1, 128>}, {pipeline_mode = #tpu.pipeline_mode<synchronous>, transform_indices = @transform_5, window_bounds = array<i64: 128, 128>}, {pipeline_mode = #tpu.pipeline_mode<synchronous>, transform_indices = @transform_6, window_bounds = array<i64: 1, 128>}, {transform_indices = @transform_7, window_bounds = array<i64: 48, 128>}]} {
    %c0 = arith.constant 0 : index
    %c0_0 = arith.constant 0 : index
    %0 = vector.load %arg1[%c0, %c0_0] : memref<48x16xf32, #tpu.memory_space<vmem>>, vector<48x16xf32>
    %1 = arith.truncf %0 : vector<48x16xf32> to vector<48x16xbf16>
    %c0_1 = arith.constant 0 : index
    %c0_2 = arith.constant 0 : index
    %2 = vector.load %arg2[%c0_1, %c0_2] : memref<16x128xbf16, #tpu.memory_space<vmem>>, vector<16x128xbf16>
    %cst = arith.constant dense<0.000000e+00> : vector<48x128xf32>
    %3 = tpu.matmul %1, %2, %cst {dimension_numbers = #tpu.dot_dimension_numbers<[1], [0], [0], [1], [0, 0, 1, 1], [], []>} : vector<48x16xbf16>, vector<16x128xbf16>, vector<48x128xf32> -> vector<48x128xf32>
    %c0_3 = arith.constant 0 : index
    %c0_4 = arith.constant 0 : index
    %4 = vector.load %arg3[%c0_3, %c0_4] : memref<1x128xf32, #tpu.memory_space<vmem>>, vector<1x128xf32>
    %5 = vector.broadcast %4 : vector<1x128xf32> to vector<48x128xf32>
    %6 = arith.addf %3, %5 : vector<48x128xf32>
    %cst_5 = arith.constant 0.000000e+00 : f32
    %7 = vector.broadcast %cst_5 : f32 to vector<48x128xf32>
    %8 = arith.maximumf %6, %7 : vector<48x128xf32>
    %9 = arith.truncf %8 : vector<48x128xf32> to vector<48x128xbf16>
    %c0_6 = arith.constant 0 : index
    %c0_7 = arith.constant 0 : index
    %10 = vector.load %arg4[%c0_6, %c0_7] : memref<128x128xbf16, #tpu.memory_space<vmem>>, vector<128x128xbf16>
    %cst_8 = arith.constant dense<0.000000e+00> : vector<48x128xf32>
    %11 = tpu.matmul %9, %10, %cst_8 {dimension_numbers = #tpu.dot_dimension_numbers<[1], [0], [0], [1], [0, 0, 1, 1], [], []>} : vector<48x128xbf16>, vector<128x128xbf16>, vector<48x128xf32> -> vector<48x128xf32>
    %c0_9 = arith.constant 0 : index
    %c0_10 = arith.constant 0 : index
    %12 = vector.load %arg5[%c0_9, %c0_10] : memref<1x128xf32, #tpu.memory_space<vmem>>, vector<1x128xf32>
    %13 = vector.broadcast %12 : vector<1x128xf32> to vector<48x128xf32>
    %14 = arith.addf %11, %13 : vector<48x128xf32>
    %cst_11 = arith.constant 0.000000e+00 : f32
    %15 = vector.broadcast %cst_11 : f32 to vector<48x128xf32>
    %16 = arith.maximumf %14, %15 : vector<48x128xf32>
    %17 = arith.truncf %16 : vector<48x128xf32> to vector<48x128xbf16>
    %c0_12 = arith.constant 0 : index
    %c0_13 = arith.constant 0 : index
    %18 = vector.load %arg6[%c0_12, %c0_13] : memref<128x128xbf16, #tpu.memory_space<vmem>>, vector<128x128xbf16>
    %cst_14 = arith.constant dense<0.000000e+00> : vector<48x128xf32>
    %19 = tpu.matmul %17, %18, %cst_14 {dimension_numbers = #tpu.dot_dimension_numbers<[1], [0], [0], [1], [0, 0, 1, 1], [], []>} : vector<48x128xbf16>, vector<128x128xbf16>, vector<48x128xf32> -> vector<48x128xf32>
    %c0_15 = arith.constant 0 : index
    %c0_16 = arith.constant 0 : index
    %20 = vector.load %arg7[%c0_15, %c0_16] : memref<1x128xf32, #tpu.memory_space<vmem>>, vector<1x128xf32>
    %21 = vector.broadcast %20 : vector<1x128xf32> to vector<48x128xf32>
    %22 = arith.addf %19, %21 : vector<48x128xf32>
    %23 = tpu.iota {dimensions = array<i32: 1>} : vector<48x128xi32>
    %c4_i32 = arith.constant 4 : i32
    %24 = vector.broadcast %c4_i32 : i32 to vector<48x128xi32>
    %25 = arith.cmpi slt, %23, %24 : vector<48x128xi32>
    %cst_17 = arith.constant -1.000000e+30 : f32
    %26 = vector.broadcast %cst_17 : f32 to vector<48x128xf32>
    %27 = arith.select %25, %22, %26 : vector<48x128xi1>, vector<48x128xf32>
    %cst_18 = arith.constant dense<0xFF800000> : vector<48xf32>
    %28 = vector.multi_reduction <maximumf>, %27, %cst_18 [1] : vector<48x128xf32> to vector<48xf32>
    %29 = vector.shape_cast %28 : vector<48xf32> to vector<48x1xf32>
    %30 = vector.broadcast %29 : vector<48x1xf32> to vector<48x128xf32>
    %31 = arith.subf %27, %30 : vector<48x128xf32>
    %32 = math.exp %31 : vector<48x128xf32>
    %cst_19 = arith.constant dense<0.000000e+00> : vector<48xf32>
    %33 = vector.multi_reduction <add>, %32, %cst_19 [1] : vector<48x128xf32> to vector<48xf32>
    %34 = vector.shape_cast %33 : vector<48xf32> to vector<48x1xf32>
    %35 = vector.broadcast %34 : vector<48x1xf32> to vector<48x128xf32>
    %36 = arith.divf %32, %35 : vector<48x128xf32>
    %37 = arith.truncf %36 : vector<48x128xf32> to vector<48x128xbf16>
    %c0_20 = arith.constant 0 : index
    %c0_21 = arith.constant 0 : index
    %38 = vector.load %arg8[%c0_20, %c0_21] : memref<48x128xbf16, #tpu.memory_space<vmem>>, vector<48x128xbf16>
    tpu.vector_store %arg8[%c0_20, %c0_21], %37 {strides = array<i32>} : memref<48x128xbf16, #tpu.memory_space<vmem>>, vector<48x128xbf16>,
    return
  }
  func.func @transform_0(%arg0: i32) -> (i32, i32) {
    %c0_i32 = arith.constant 0 : i32
    %c0_i32_0 = arith.constant 0 : i32
    return %arg0, %c0_i32 : i32, i32
  }
  func.func @transform_1(%arg0: i32) -> (i32, i32) {
    %c0_i32 = arith.constant 0 : i32
    %c0_i32_0 = arith.constant 0 : i32
    %c0_i32_1 = arith.constant 0 : i32
    return %c0_i32, %c0_i32_0 : i32, i32
  }
  func.func @transform_2(%arg0: i32) -> (i32, i32) {
    %c0_i32 = arith.constant 0 : i32
    %c0_i32_0 = arith.constant 0 : i32
    %c0_i32_1 = arith.constant 0 : i32
    return %c0_i32, %c0_i32_0 : i32, i32
  }
  func.func @transform_3(%arg0: i32) -> (i32, i32) {
    %c0_i32 = arith.constant 0 : i32
    %c0_i32_0 = arith.constant 0 : i32
    %c0_i32_1 = arith.constant 0 : i32
    return %c0_i32, %c0_i32_0 : i32, i32
  }
  func.func @transform_4(%arg0: i32) -> (i32, i32) {
    %c0_i32 = arith.constant 0 : i32
    %c0_i32_0 = arith.constant 0 : i32
    %c0_i32_1 = arith.constant 0 : i32
    return %c0_i32, %c0_i32_0 : i32, i32
  }
  func.func @transform_5(%arg0: i32) -> (i32, i32) {
    %c0_i32 = arith.constant 0 : i32
    %c0_i32_0 = arith.constant 0 : i32
    %c0_i32_1 = arith.constant 0 : i32
    return %c0_i32, %c0_i32_0 : i32, i32
  }
  func.func @transform_6(%arg0: i32) -> (i32, i32) {
    %c0_i32 = arith.constant 0 : i32
    %c0_i32_0 = arith.constant 0 : i32
    %c0_i32_1 = arith.constant 0 : i32
    return %c0_i32, %c0_i32_0 : i32, i32
  }
  func.func @transform_7(%arg0: i32) -> (i32, i32) {
    %c0_i32 = arith.constant 0 : i32
    %c0_i32_0 = arith.constant 0 : i32
    return %arg0, %c0_i32 : i32, i32
  }
}

</mosaic_0001>

<llo_original>
// kernel: tpu_custom_call.1
$region0: #{tpu_custom_call.1}
  #allocation0 [shape = 'u32[]', space=smem, size = 0x4, offset = 0x4, fixed_abs, tag = 'smem constant byte address 0x4 - core index']
  #allocation1 [shape = 'u32[144,128]{1,0:T(1,128)}', space=vmem, size = 0x12000, scoped, tag = 'internal scratch']
  %s0 = inlined_call_operand.vmem [shape: f32[48,16], index: 0, kind: input, shape index: {}]
  %s1 = inlined_call_operand.vmem [shape: bf16[16,128], index: 1, kind: input, shape index: {}]
  %s2 = inlined_call_operand.vmem [shape: f32[1,128], index: 2, kind: input, shape index: {}]
  %s3 = inlined_call_operand.vmem [shape: bf16[128,128], index: 3, kind: input, shape index: {}]
  %s4 = inlined_call_operand.vmem [shape: f32[1,128], index: 4, kind: input, shape index: {}]
  %s5 = inlined_call_operand.hbm [shape: bf16[128,128], index: 5, kind: input, shape index: {}]
  %s6 = inlined_call_operand.vmem [shape: f32[1,128], index: 6, kind: input, shape index: {}]
  %s7 = inlined_call_operand.hbm [shape: bf16[48,128], index: 7, kind: output, shape index: {}]
  %s8 = sld [smem:[#allocation0]]
  $region42: #{tpu_custom_call.1} parent=0
    _
  %s10 = ssub.s32 1, %s8
  %s11 = scalar_select 0, %s10, %s8
  $region1: #{tpu_custom_call.1} parent=0
    #allocation2 [shape = 'u8[32768]{0}', space=vmem, size = 0x8000, scoped, tag = 'input window, operand 5, single buffered']
    #allocation3 [shape = 's32[1]{0}', space=sflag, size = 0x4, scoped, tag = 'scoped memory for tpu_custom_call.1']
    #allocation4 [shape = 's32[1]{0}', space=sflag, size = 0x4, scoped, tag = 'scoped memory for tpu_custom_call.1']
    #allocation5 [shape = 'u8[12288]{0}', space=vmem, size = 0x3000, scoped, tag = 'output window, operand 0, single buffered']
    %12 = vsyncpa [#allocation3], 0
    %13 = vsyncpa [#allocation4], 0
    // Predicated region
    $region2: #{tpu_custom_call.1} parent=1 // pred_check
      _
    $region3: #{tpu_custom_call.1} parent=1 // pred_check_branch
      %15 = sbr.rel (0) target = $region5
    $region4: #{tpu_custom_call.1} parent=1 // pred_region
      _
    $region5: #{tpu_custom_call.1} parent=1 // pred_fallthru
      _
    // Predicated region
    $region6: #{tpu_custom_call.1} parent=1 // pred_check
      _
    $region7: #{tpu_custom_call.1} parent=1 // pred_check_branch
      %17 = sbr.rel (0) target = $region9
    $region8: #{tpu_custom_call.1} parent=1 // pred_region
      _
    $region9: #{tpu_custom_call.1} parent=1 // pred_fallthru
      _
    // Predicated region
    $region10: #{tpu_custom_call.1} parent=1 // pred_check
      _
    $region11: #{tpu_custom_call.1} parent=1 // pred_check_branch
      %19 = sbr.rel (0) target = $region13
    $region12: #{tpu_custom_call.1} parent=1 // pred_region
      _
    $region13: #{tpu_custom_call.1} parent=1 // pred_fallthru
      _
    // Predicated region
    $region14: #{tpu_custom_call.1} parent=1 // pred_check
      _
    $region15: #{tpu_custom_call.1} parent=1 // pred_check_branch
      %21 = sbr.rel (0) target = $region17
    $region16: #{tpu_custom_call.1} parent=1 // pred_region
      _
    $region17: #{tpu_custom_call.1} parent=1 // pred_fallthru
      _
    // Predicated region
    $region18: #{tpu_custom_call.1} parent=1 // pred_check
      _
    $region19: #{tpu_custom_call.1} parent=1 // pred_check_branch
      %23 = sbr.rel (0) target = $region21
    $region20: #{tpu_custom_call.1} parent=1 // pred_region
      _
    $region21: #{tpu_custom_call.1} parent=1 // pred_fallthru
      _
    // Predicated region
    $region22: #{tpu_custom_call.1} parent=1 // pred_check
      _
    $region23: #{tpu_custom_call.1} parent=1 // pred_check_branch
      %25 = sbr.rel (0) target = $region25
    $region24: #{tpu_custom_call.1} parent=1 // pred_region
      %s27 = ssub.s32 1024, 1024
      %28 = vsyncadd [#allocation3], %s27
      %s29 = sshll.u32 [#allocation2], 4
      %s30 = int_to_ptr.vmem [resolvable:$true] %s29
      %35 = dma.hbm_to_vmem [thread:$0]  %s5, 1024, %s30, [#allocation3], 64, 64, 4
    $region25: #{tpu_custom_call.1} parent=1 // pred_fallthru
      _
    // Predicated region
    $region26: #{tpu_custom_call.1} parent=1 // pred_check
      _
    $region27: #{tpu_custom_call.1} parent=1 // pred_check_branch
      %37 = sbr.rel (0) target = $region29
    $region28: #{tpu_custom_call.1} parent=1 // pred_region
      _
    $region29: #{tpu_custom_call.1} parent=1 // pred_fallthru
      _
    // Predicated region
    $region30: #{tpu_custom_call.1} parent=1 // pred_check
      _
    $region31: #{tpu_custom_call.1} parent=1 // pred_check_branch
      %39 = sbr.rel (0) target = $region33
    $region32: #{tpu_custom_call.1} parent=1 // pred_region
      %40 = dma.done [#allocation3], 1024
    $region33: #{tpu_custom_call.1} parent=1 // pred_fallthru
      _
    %v42 = vld [vmem:[%s0] sm:$0xff]
    %v43 = vld [vmem:[%s0 + $0x8] sm:$0xff]
    %v44 = vld [vmem:[%s0 + $0x10] sm:$0xff]
    %v45 = vld [vmem:[%s0 + $0x18] sm:$0xff]
    %v46 = vld [vmem:[%s0 + $0x20] sm:$0xff]
    %v47 = vld [vmem:[%s0 + $0x28] sm:$0xff]
    %v48 = vpack.c.bf16 %v43, %v42
    %v49 = vpack.c.bf16 %v45, %v44
    %v50 = vpack.c.bf16 %v47, %v46
    %v51 = vld [vmem:[%s1] sm:$0xf]
    %v52 = vld [vmem:[%s1 + $0x4] sm:$0xf]
    %v53 = vld [vmem:[%s2] sm:$0x1]
    %v55 = vlaneseq
    %v56 = vshrl.u32 %v55, 7
    %v57 = vsub.s32 0, %v56
    %v58 = vrot.slane %v53, %v57
    %v62 = vunpack.c.l.b16 %v51
    %v63 = vunpack.c.l.b16 %v52
    %v64 = vpack.c.b16 %v63, %v62
    %vm66 = vcmask 130048
    %v68 = vsel %vm66, %v48, 0
    %v71 = vsel %vm66, %v49, 0
    %v74 = vsel %vm66, %v50, 0
    %76 = vmatprep.subr.bf16.mxu0 0
    %77 = vmatpush1.bf16.msra.mxu0 %v64
    %78 = vmatprep.subr.bf16.mxu0 0
    %79 = vmatpush1.bf16.msra.mxu0 0
    %80 = vmatprep.subr.bf16.mxu0 0
    %81 = vmatpush1.bf16.msra.mxu0 0
    %82 = vmatprep.subr.bf16.mxu0 0
    %83 = vmatpush1.bf16.msra.mxu0 0
    %84 = vmatprep.subr.bf16.mxu0 0
    %85 = vmatpush1.bf16.msra.mxu0 0
    %86 = vmatprep.subr.bf16.mxu0 0
    %87 = vmatpush1.bf16.msra.mxu0 0
    %88 = vmatprep.subr.bf16.mxu0 0
    %89 = vmatpush1.bf16.msra.mxu0 0
    %90 = vmatprep.subr.bf16.mxu0 0
    %91 = vmatpush1.bf16.msra.mxu0 0
    %92 = vmatprep.subr.bf16.mxu0 0
    %93 = vmatpush1.bf16.msra.mxu0 0
    %94 = vmatprep.subr.bf16.mxu0 0
    %95 = vmatpush1.bf16.msra.mxu0 0
    %96 = vmatprep.subr.bf16.mxu0 0
    %97 = vmatpush1.bf16.msra.mxu0 0
    %98 = vmatprep.subr.bf16.mxu0 0
    %99 = vmatpush1.bf16.msra.mxu0 0
    %100 = vmatprep.subr.bf16.mxu0 0
    %101 = vmatpush1.bf16.msra.mxu0 0
    %102 = vmatprep.subr.bf16.mxu0 0
    %103 = vmatpush1.bf16.msra.mxu0 0
    %104 = vmatprep.subr.bf16.mxu0 0
    %105 = vmatpush1.bf16.msra.mxu0 0
    %106 = vmatprep.subr.bf16.mxu0 0
    %107 = vmatpush1.bf16.msra.mxu0 0
    %108 = vmatprep.mubr.bf16.mxu0 0
    %109 = vmatmul.mubr.bf16.gmra.mrb[0].mxu0 %v68
    %v110 = vpop.f32.mrb[0].mxu0
    %v111 = vadd.f32 %v58, %v110
    %v112 = vpop.f32.mrb[0].mxu0
    %v113 = vpop.f32.mrb[0].mxu0
    %v114 = vadd.f32 %v58, %v113
    %v115 = vpop.f32.mrb[0].mxu0
    %116 = vmatprep.mubr.bf16.mxu0 0
    %117 = vmatmul.mubr.bf16.gmra.mrb[0].mxu0 %v71
    %v118 = vpop.f32.mrb[0].mxu0
    %v119 = vadd.f32 %v58, %v118
    %v120 = vpop.f32.mrb[0].mxu0
    %v121 = vpop.f32.mrb[0].mxu0
    %v122 = vadd.f32 %v58, %v121
    %v123 = vpop.f32.mrb[0].mxu0
    %124 = vmatprep.mubr.bf16.mxu0 0
    %125 = vmatmul.mubr.bf16.gmra.mrb[0].mxu0 %v74
    %v126 = vpop.f32.mrb[0].mxu0
    %v127 = vadd.f32 %v58, %v126
    %v128 = vpop.f32.mrb[0].mxu0
    %v129 = vpop.f32.mrb[0].mxu0
    %v130 = vadd.f32 %v58, %v129
    %v131 = vpop.f32.mrb[0].mxu0
    %132 = vdwg.mxu0
    %v133 = vmax.f32 %v111, 0.0
    %v134 = vmax.f32 %v114, 0.0
    %v135 = vmax.f32 %v119, 0.0
    %v136 = vmax.f32 %v122, 0.0
    %v137 = vmax.f32 %v127, 0.0
    %v138 = vmax.f32 %v130, 0.0
    %v139 = vpack.c.bf16 %v134, %v133
    %v140 = vpack.c.bf16 %v136, %v135
    %v141 = vpack.c.bf16 %v138, %v137
    %v142 = vld [vmem:[%s3] sm:$0xf]
    %v143 = vld [vmem:[%s3 + $0x4] sm:$0xf]
    %v144 = vld [vmem:[%s3 + $0x8] sm:$0xf]
    %v145 = vld [vmem:[%s3 + $0xc] sm:$0xf]
    %v146 = vld [vmem:[%s3 + $0x10] sm:$0xf]
    %v147 = vld [vmem:[%s3 + $0x14] sm:$0xf]
    %v148 = vld [vmem:[%s3 + $0x18] sm:$0xf]
    %v149 = vld [vmem:[%s3 + $0x1c] sm:$0xf]
    %v150 = vld [vmem:[%s3 + $0x20] sm:$0xf]
    %v151 = vld [vmem:[%s3 + $0x24] sm:$0xf]
    %v152 = vld [vmem:[%s3 + $0x28] sm:$0xf]
    %v153 = vld [vmem:[%s3 + $0x2c] sm:$0xf]
    %v154 = vld [vmem:[%s3 + $0x30] sm:$0xf]
    %v155 = vld [vmem:[%s3 + $0x34] sm:$0xf]
    %v156 = vld [vmem:[%s3 + $0x38] sm:$0xf]
    %v157 = vld [vmem:[%s3 + $0x3c] sm:$0xf]
    %v158 = vld [vmem:[%s4] sm:$0x1]
    %v160 = vlaneseq
    %v161 = vshrl.u32 %v160, 7
    %v162 = vsub.s32 0, %v161
    %v163 = vrot.slane %v158, %v162
    %v181 = vunpack.c.l.b16 %v142
    %v182 = vunpack.c.l.b16 %v143
    %v183 = vunpack.c.l.b16 %v144
    %v184 = vunpack.c.l.b16 %v145
    %v185 = vunpack.c.l.b16 %v146
    %v186 = vunpack.c.l.b16 %v147
    %v187 = vunpack.c.l.b16 %v148
    %v188 = vunpack.c.l.b16 %v149
    %v189 = vunpack.c.l.b16 %v150
    %v190 = vunpack.c.l.b16 %v151
    %v191 = vunpack.c.l.b16 %v152
    %v192 = vunpack.c.l.b16 %v153
    %v193 = vunpack.c.l.b16 %v154
    %v194 = vunpack.c.l.b16 %v155
    %v195 = vunpack.c.l.b16 %v156
    %v196 = vunpack.c.l.b16 %v157
    %v197 = vpack.c.b16 %v182, %v181
    %v198 = vpack.c.b16 %v184, %v183
    %v199 = vpack.c.b16 %v186, %v185
    %v200 = vpack.c.b16 %v188, %v187
    %v201 = vpack.c.b16 %v190, %v189
    %v202 = vpack.c.b16 %v192, %v191
    %v203 = vpack.c.b16 %v194, %v193
    %v204 = vpack.c.b16 %v196, %v195
    %213 = vmatprep.subr.bf16.mxu0 0
    %214 = vmatpush1.bf16.msra.mxu0 %v197
    %215 = vmatprep.subr.bf16.mxu0 0
    %216 = vmatpush1.bf16.msra.mxu0 %v198
    %217 = vmatprep.subr.bf16.mxu0 0
    %218 = vmatpush1.bf16.msra.mxu0 %v199
    %219 = vmatprep.subr.bf16.mxu0 0
    %220 = vmatpush1.bf16.msra.mxu0 %v200
    %221 = vmatprep.subr.bf16.mxu0 0
    %222 = vmatpush1.bf16.msra.mxu0 %v201
    %223 = vmatprep.subr.bf16.mxu0 0
    %224 = vmatpush1.bf16.msra.mxu0 %v202
    %225 = vmatprep.subr.bf16.mxu0 0
    %226 = vmatpush1.bf16.msra.mxu0 %v203
    %227 = vmatprep.subr.bf16.mxu0 0
    %228 = vmatpush1.bf16.msra.mxu0 %v204
    %229 = vmatprep.subr.bf16.mxu0 0
    %230 = vmatpush1.bf16.msra.mxu0 0
    %231 = vmatprep.subr.bf16.mxu0 0
    %232 = vmatpush1.bf16.msra.mxu0 0
    %233 = vmatprep.subr.bf16.mxu0 0
    %234 = vmatpush1.bf16.msra.mxu0 0
    %235 = vmatprep.subr.bf16.mxu0 0
    %236 = vmatpush1.bf16.msra.mxu0 0
    %237 = vmatprep.subr.bf16.mxu0 0
    %238 = vmatpush1.bf16.msra.mxu0 0
    %239 = vmatprep.subr.bf16.mxu0 0
    %240 = vmatpush1.bf16.msra.mxu0 0
    %241 = vmatprep.subr.bf16.mxu0 0
    %242 = vmatpush1.bf16.msra.mxu0 0
    %243 = vmatprep.subr.bf16.mxu0 0
    %244 = vmatpush1.bf16.msra.mxu0 0
    %245 = vmatprep.mubr.bf16.mxu0 0
    %246 = vmatmul.mubr.bf16.gmra.mrb[0].mxu0 %v139
    %v247 = vpop.f32.mrb[0].mxu0
    %v248 = vadd.f32 %v163, %v247
    %v249 = vpop.f32.mrb[0].mxu0
    %v250 = vpop.f32.mrb[0].mxu0
    %v251 = vadd.f32 %v163, %v250
    %v252 = vpop.f32.mrb[0].mxu0
    %253 = vmatprep.mubr.bf16.mxu0 0
    %254 = vmatmul.mubr.bf16.gmra.mrb[0].mxu0 %v140
    %v255 = vpop.f32.mrb[0].mxu0
    %v256 = vadd.f32 %v163, %v255
    %v257 = vpop.f32.mrb[0].mxu0
    %v258 = vpop.f32.mrb[0].mxu0
    %v259 = vadd.f32 %v163, %v258
    %v260 = vpop.f32.mrb[0].mxu0
    %261 = vmatprep.mubr.bf16.mxu0 0
    %262 = vmatmul.mubr.bf16.gmra.mrb[0].mxu0 %v141
    %v263 = vpop.f32.mrb[0].mxu0
    %v264 = vadd.f32 %v163, %v263
    %v265 = vpop.f32.mrb[0].mxu0
    %v266 = vpop.f32.mrb[0].mxu0
    %v267 = vadd.f32 %v163, %v266
    %v268 = vpop.f32.mrb[0].mxu0
    %269 = vdwg.mxu0
    %v270 = vmax.f32 %v248, 0.0
    %v271 = vmax.f32 %v251, 0.0
    %v272 = vmax.f32 %v256, 0.0
    %v273 = vmax.f32 %v259, 0.0
    %v274 = vmax.f32 %v264, 0.0
    %v275 = vmax.f32 %v267, 0.0
    %v276 = vpack.c.bf16 %v271, %v270
    %v277 = vpack.c.bf16 %v273, %v272
    %v278 = vpack.c.bf16 %v275, %v274
    %v279 = vld [vmem:[#allocation2] sm:$0xf]
    %v280 = vld [vmem:[#allocation2 + $0x4] sm:$0xf]
    %v281 = vld [vmem:[#allocation2 + $0x8] sm:$0xf]
    %v282 = vld [vmem:[#allocation2 + $0xc] sm:$0xf]
    %v283 = vld [vmem:[#allocation2 + $0x10] sm:$0xf]
    %v284 = vld [vmem:[#allocation2 + $0x14] sm:$0xf]
    %v285 = vld [vmem:[#allocation2 + $0x18] sm:$0xf]
    %v286 = vld [vmem:[#allocation2 + $0x1c] sm:$0xf]
    %v287 = vld [vmem:[#allocation2 + $0x20] sm:$0xf]
    %v288 = vld [vmem:[#allocation2 + $0x24] sm:$0xf]
    %v289 = vld [vmem:[#allocation2 + $0x28] sm:$0xf]
    %v290 = vld [vmem:[#allocation2 + $0x2c] sm:$0xf]
    %v291 = vld [vmem:[#allocation2 + $0x30] sm:$0xf]
    %v292 = vld [vmem:[#allocation2 + $0x34] sm:$0xf]
    %v293 = vld [vmem:[#allocation2 + $0x38] sm:$0xf]
    %v294 = vld [vmem:[#allocation2 + $0x3c] sm:$0xf]
    %v295 = vld [vmem:[%s6] sm:$0x1]
    %v297 = vlaneseq
    %v298 = vshrl.u32 %v297, 7
    %v299 = vsub.s32 0, %v298
    %v300 = vrot.slane %v295, %v299
    %v318 = vunpack.c.l.b16 %v279
    %v319 = vunpack.c.l.b16 %v280
    %v320 = vunpack.c.l.b16 %v281
    %v321 = vunpack.c.l.b16 %v282
    %v322 = vunpack.c.l.b16 %v283
    %v323 = vunpack.c.l.b16 %v284
    %v324 = vunpack.c.l.b16 %v285
    %v325 = vunpack.c.l.b16 %v286
    %v326 = vunpack.c.l.b16 %v287
    %v327 = vunpack.c.l.b16 %v288
    %v328 = vunpack.c.l.b16 %v289
    %v329 = vunpack.c.l.b16 %v290
    %v330 = vunpack.c.l.b16 %v291
    %v331 = vunpack.c.l.b16 %v292
    %v332 = vunpack.c.l.b16 %v293
    %v333 = vunpack.c.l.b16 %v294
    %v334 = vpack.c.b16 %v319, %v318
    %v335 = vpack.c.b16 %v321, %v320
    %v336 = vpack.c.b16 %v323, %v322
    %v337 = vpack.c.b16 %v325, %v324
    %v338 = vpack.c.b16 %v327, %v326
    %v339 = vpack.c.b16 %v329, %v328
    %v340 = vpack.c.b16 %v331, %v330
    %v341 = vpack.c.b16 %v333, %v332
    %350 = vmatprep.subr.bf16.mxu0 0
    %351 = vmatpush1.bf16.msra.mxu0 %v334
    %352 = vmatprep.subr.bf16.mxu0 0
    %353 = vmatpush1.bf16.msra.mxu0 %v335
    %354 = vmatprep.subr.bf16.mxu0 0
    %355 = vmatpush1.bf16.msra.mxu0 %v336
    %356 = vmatprep.subr.bf16.mxu0 0
    %357 = vmatpush1.bf16.msra.mxu0 %v337
    %358 = vmatprep.subr.bf16.mxu0 0
    %359 = vmatpush1.bf16.msra.mxu0 %v338
    %360 = vmatprep.subr.bf16.mxu0 0
    %361 = vmatpush1.bf16.msra.mxu0 %v339
    %362 = vmatprep.subr.bf16.mxu0 0
    %363 = vmatpush1.bf16.msra.mxu0 %v340
    %364 = vmatprep.subr.bf16.mxu0 0
    %365 = vmatpush1.bf16.msra.mxu0 %v341
    %366 = vmatprep.subr.bf16.mxu0 0
    %367 = vmatpush1.bf16.msra.mxu0 0
    %368 = vmatprep.subr.bf16.mxu0 0
    %369 = vmatpush1.bf16.msra.mxu0 0
    %370 = vmatprep.subr.bf16.mxu0 0
    %371 = vmatpush1.bf16.msra.mxu0 0
    %372 = vmatprep.subr.bf16.mxu0 0
    %373 = vmatpush1.bf16.msra.mxu0 0
    %374 = vmatprep.subr.bf16.mxu0 0
    %375 = vmatpush1.bf16.msra.mxu0 0
    %376 = vmatprep.subr.bf16.mxu0 0
    %377 = vmatpush1.bf16.msra.mxu0 0
    %378 = vmatprep.subr.bf16.mxu0 0
    %379 = vmatpush1.bf16.msra.mxu0 0
    %380 = vmatprep.subr.bf16.mxu0 0
    %381 = vmatpush1.bf16.msra.mxu0 0
    %382 = vmatprep.mubr.bf16.mxu0 0
    %383 = vmatmul.mubr.bf16.gmra.mrb[0].mxu0 %v276
    %v384 = vpop.f32.mrb[0].mxu0
    %v385 = vadd.f32 %v300, %v384
    %v386 = vpop.f32.mrb[0].mxu0
    %v387 = vpop.f32.mrb[0].mxu0
    %v388 = vadd.f32 %v300, %v387
    %v389 = vpop.f32.mrb[0].mxu0
    %390 = vmatprep.mubr.bf16.mxu0 0
    %391 = vmatmul.mubr.bf16.gmra.mrb[0].mxu0 %v277
    %v392 = vpop.f32.mrb[0].mxu0
    %v393 = vadd.f32 %v300, %v392
    %v394 = vpop.f32.mrb[0].mxu0
    %v395 = vpop.f32.mrb[0].mxu0
    %v396 = vadd.f32 %v300, %v395
    %v397 = vpop.f32.mrb[0].mxu0
    %398 = vmatprep.mubr.bf16.mxu0 0
    %399 = vmatmul.mubr.bf16.gmra.mrb[0].mxu0 %v278
    %v400 = vpop.f32.mrb[0].mxu0
    %v401 = vadd.f32 %v300, %v400
    %v402 = vpop.f32.mrb[0].mxu0
    %v403 = vpop.f32.mrb[0].mxu0
    %v404 = vadd.f32 %v300, %v403
    %v405 = vpop.f32.mrb[0].mxu0
    %406 = vdwg.mxu0
    %v407 = vlaneseq
    %v408 = vand.u32 %v407, 127
    %vm409 = vcmp.lt.s32.totalorder %v408, 4
    %v410 = vsel %vm409, %v385, -1e+30
    %v411 = vsel %vm409, %v388, -1e+30
    %v412 = vsel %vm409, %v393, -1e+30
    %v413 = vsel %vm409, %v396, -1e+30
    %v414 = vsel %vm409, %v401, -1e+30
    %v415 = vsel %vm409, %v404, -1e+30
    %416 = vmax.xlane.f32.xlu0 %v410
    %v417 = vpop.xlane.xlu0 %416
    %418 = vmax.xlane.f32.xlu0 %v411
    %v419 = vpop.xlane.xlu0 %418
    %420 = vmax.xlane.f32.xlu0 %v412
    %v421 = vpop.xlane.xlu0 %420
    %422 = vmax.xlane.f32.xlu0 %v413
    %v423 = vpop.xlane.xlu0 %422
    %424 = vmax.xlane.f32.xlu0 %v414
    %v425 = vpop.xlane.xlu0 %424
    %426 = vmax.xlane.f32.xlu0 %v415
    %v427 = vpop.xlane.xlu0 %426
    %v428 = vsub.f32 %v410, %v417
    %v429 = vsub.f32 %v411, %v419
    %v430 = vsub.f32 %v412, %v421
    %v431 = vsub.f32 %v413, %v423
    %v432 = vsub.f32 %v414, %v425
    %v433 = vsub.f32 %v415, %v427
    %v434 = vmul.f32 %v428, 1.442695
    %v435 = vpow.pop %v434
    %v436 = vmul.f32 %v429, 1.442695
    %v437 = vpow.pop %v436
    %v438 = vmul.f32 %v430, 1.442695
    %v439 = vpow.pop %v438
    %v440 = vmul.f32 %v431, 1.442695
    %v441 = vpow.pop %v440
    %v442 = vmul.f32 %v432, 1.442695
    %v443 = vpow.pop %v442
    %v444 = vmul.f32 %v433, 1.442695
    %v445 = vpow.pop %v444
    %446 = vadd.xlane.f32.xlu0 %v435
    %v447 = vpop.xlane.xlu0 %446
    %448 = vadd.xlane.f32.xlu0 %v437
    %v449 = vpop.xlane.xlu0 %448
    %450 = vadd.xlane.f32.xlu0 %v439
    %v451 = vpop.xlane.xlu0 %450
    %452 = vadd.xlane.f32.xlu0 %v441
    %v453 = vpop.xlane.xlu0 %452
    %454 = vadd.xlane.f32.xlu0 %v443
    %v455 = vpop.xlane.xlu0 %454
    %456 = vadd.xlane.f32.xlu0 %v445
    %v457 = vpop.xlane.xlu0 %456
    %v458 = vrcp.pop %v447
    %v459 = vmul.f32 %v435, %v458
    %v460 = vrcp.pop %v449
    %v461 = vmul.f32 %v437, %v460
    %v462 = vrcp.pop %v451
    %v463 = vmul.f32 %v439, %v462
    %v464 = vrcp.pop %v453
    %v465 = vmul.f32 %v441, %v464
    %v466 = vrcp.pop %v455
    %v467 = vmul.f32 %v443, %v466
    %v468 = vrcp.pop %v457
    %v469 = vmul.f32 %v445, %v468
    %v470 = vpack.c.bf16 %v461, %v459
    %v471 = vpack.c.bf16 %v465, %v463
    %v472 = vpack.c.bf16 %v469, %v467
    %v476 = vunpack.c.l.b16 %v470
    %v477 = vunpack.c.h.b16 %v470
    %v478 = vunpack.c.l.b16 %v471
    %v479 = vunpack.c.h.b16 %v471
    %v480 = vunpack.c.l.b16 %v472
    %v481 = vunpack.c.h.b16 %v472
    %v482 = vpack.c.b16 %v476, %v476
    %v483 = vpack.c.b16 %v477, %v477
    %v484 = vpack.c.b16 %v478, %v478
    %v485 = vpack.c.b16 %v479, %v479
    %v486 = vpack.c.b16 %v480, %v480
    %v487 = vpack.c.b16 %v481, %v481
    %494 = vst [vmem:[#allocation5] sm:$0xf] %v482
    %495 = vst [vmem:[#allocation5 + $0x4] sm:$0xf] %v483
    %496 = vst [vmem:[#allocation5 + $0x8] sm:$0xf] %v484
    %497 = vst [vmem:[#allocation5 + $0xc] sm:$0xf] %v485
    %498 = vst [vmem:[#allocation5 + $0x10] sm:$0xf] %v486
    %499 = vst [vmem:[#allocation5 + $0x14] sm:$0xf] %v487
    // Predicated region
    $region34: #{tpu_custom_call.1} parent=1 // pred_check
      _
    $region35: #{tpu_custom_call.1} parent=1 // pred_check_branch
      %501 = sbr.rel (0) target = $region37
    $region36: #{tpu_custom_call.1} parent=1 // pred_region
      %s503 = ssub.s32 384, 384
      %504 = vsyncadd [#allocation4], %s503
      %s505 = sshll.u32 [#allocation5], 4
      %s506 = int_to_ptr.vmem [resolvable:$true] %s505
      %511 = dma.vmem_to_hbm [thread:$0]  %s506, 384, %s7, [#allocation4], 64, 64, 4
    $region37: #{tpu_custom_call.1} parent=1 // pred_fallthru
      _
    // Predicated region
    $region38: #{tpu_custom_call.1} parent=1 // pred_check
      _
    $region39: #{tpu_custom_call.1} parent=1 // pred_check_branch
      %513 = sbr.rel (0) target = $region41
    $region40: #{tpu_custom_call.1} parent=1 // pred_region
      %514 = dma.done [#allocation4], 384
    $region41: #{tpu_custom_call.1} parent=1 // pred_fallthru
      _
    %515 = vsyncpa [#allocation3], 1
    %516 = vsyncpa [#allocation4], 1

// kernel: tpu_custom_call.1
$region0: #{tpu_custom_call.1}
  #allocation0 [shape = 'u32[]', space=smem, size = 0x4, offset = 0x4, fixed_abs, tag = 'smem constant byte address 0x4 - core index']
  #allocation1 [shape = 'u32[144,128]{1,0:T(1,128)}', space=vmem, size = 0x12000, scoped, tag = 'internal scratch']
  %s0 = inlined_call_operand.vmem [shape: f32[48,16], index: 0, kind: input, shape index: {}]
  %s1 = inlined_call_operand.vmem [shape: bf16[16,128], index: 1, kind: input, shape index: {}]
  %s2 = inlined_call_operand.vmem [shape: f32[1,128], index: 2, kind: input, shape index: {}]
  %s3 = inlined_call_operand.vmem [shape: bf16[128,128], index: 3, kind: input, shape index: {}]
  %s4 = inlined_call_operand.vmem [shape: f32[1,128], index: 4, kind: input, shape index: {}]
  %s5 = inlined_call_operand.hbm [shape: bf16[128,128], index: 5, kind: input, shape index: {}]
  %s6 = inlined_call_operand.vmem [shape: f32[1,128], index: 6, kind: input, shape index: {}]
  %s7 = inlined_call_operand.hbm [shape: bf16[48,128], index: 7, kind: output, shape index: {}]
  %s8 = sld [smem:[#allocation0]]
  $region42: #{tpu_custom_call.1} parent=0
    _
  %s10 = ssub.s32 1, %s8
  %s11 = scalar_select 0, %s10, %s8
  $region1: #{tpu_custom_call.1} parent=0
    #allocation2 [shape = 'u8[32768]{0}', space=vmem, size = 0x8000, scoped, tag = 'input window, operand 5, single buffered']
    #allocation3 [shape = 's32[1]{0}', space=sflag, size = 0x4, scoped, tag = 'scoped memory for tpu_custom_call.1']
    #allocation4 [shape = 's32[1]{0}', space=sflag, size = 0x4, scoped, tag = 'scoped memory for tpu_custom_call.1']
    #allocation5 [shape = 'u8[12288]{0}', space=vmem, size = 0x3000, scoped, tag = 'output window, operand 0, single buffered']
    %12 = vsyncpa [#allocation3], 0
    %13 = vsyncpa [#allocation4], 0
    // Predicated region
    $region2: #{tpu_custom_call.1} parent=1 // pred_check
      _
    $region3: #{tpu_custom_call.1} parent=1 // pred_check_branch
      %15 = sbr.rel (0) target = $region5
    $region4: #{tpu_custom_call.1} parent=1 // pred_region
      _
    $region5: #{tpu_custom_call.1} parent=1 // pred_fallthru
      _
    // Predicated region
    $region6: #{tpu_custom_call.1} parent=1 // pred_check
      _
    $region7: #{tpu_custom_call.1} parent=1 // pred_check_branch
      %17 = sbr.rel (0) target = $region9
    $region8: #{tpu_custom_call.1} parent=1 // pred_region
      _
    $region9: #{tpu_custom_call.1} parent=1 // pred_fallthru
      _
    // Predicated region
    $region10: #{tpu_custom_call.1} parent=1 // pred_check
      _
    $region11: #{tpu_custom_call.1} parent=1 // pred_check_branch
      %19 = sbr.rel (0) target = $region13
    $region12: #{tpu_custom_call.1} parent=1 // pred_region
      _
    $region13: #{tpu_custom_call.1} parent=1 // pred_fallthru
      _
    // Predicated region
    $region14: #{tpu_custom_call.1} parent=1 // pred_check
      _
    $region15: #{tpu_custom_call.1} parent=1 // pred_check_branch
      %21 = sbr.rel (0) target = $region17
    $region16: #{tpu_custom_call.1} parent=1 // pred_region
      _
    $region17: #{tpu_custom_call.1} parent=1 // pred_fallthru
      _
    // Predicated region
    $region18: #{tpu_custom_call.1} parent=1 // pred_check
      _
    $region19: #{tpu_custom_call.1} parent=1 // pred_check_branch
      %23 = sbr.rel (0) target = $region21
    $region20: #{tpu_custom_call.1} parent=1 // pred_region
      _
    $region21: #{tpu_custom_call.1} parent=1 // pred_fallthru
      _
    // Predicated region
    $region22: #{tpu_custom_call.1} parent=1 // pred_check
      _
    $region23: #{tpu_custom_call.1} parent=1 // pred_check_branch
      %25 = sbr.rel (0) target = $region25
    $region24: #{tpu_custom_call.1} parent=1 // pred_region
      %s27 = ssub.s32 1024, 1024
      %28 = vsyncadd [#allocation3], %s27
      %s29 = sshll.u32 [#allocation2], 4
      %s30 = int_to_ptr.vmem [resolvable:$true] %s29
      %35 = dma.hbm_to_vmem [thread:$0]  %s5, 1024, %s30, [#allocation3], 64, 64, 4
    $region25: #{tpu_custom_call.1} parent=1 // pred_fallthru
      _
    // Predicated region
    $region26: #{tpu_custom_call.1} parent=1 // pred_check
      _
    $region27: #{tpu_custom_call.1} parent=1 // pred_check_branch
      %37 = sbr.rel (0) target = $region29
    $region28: #{tpu_custom_call.1} parent=1 // pred_region
      _
    $region29: #{tpu_custom_call.1} parent=1 // pred_fallthru
      _
    // Predicated region
    $region30: #{tpu_custom_call.1} parent=1 // pred_check
      _
    $region31: #{tpu_custom_call.1} parent=1 // pred_check_branch
      %39 = sbr.rel (0) target = $region33
    $region32: #{tpu_custom_call.1} parent=1 // pred_region
      %40 = dma.done [#allocation3], 1024
    $region33: #{tpu_custom_call.1} parent=1 // pred_fallthru
      _
    %v42 = vld [vmem:[%s0] sm:$0xff]
    %v43 = vld [vmem:[%s0 + $0x8] sm:$0xff]
    %v44 = vld [vmem:[%s0 + $0x10] sm:$0xff]
    %v45 = vld [vmem:[%s0 + $0x18] sm:$0xff]
    %v46 = vld [vmem:[%s0 + $0x20] sm:$0xff]
    %v47 = vld [vmem:[%s0 + $0x28] sm:$0xff]
    %v48 = vpack.c.bf16 %v43, %v42
    %v49 = vpack.c.bf16 %v45, %v44
    %v50 = vpack.c.bf16 %v47, %v46
    %v51 = vld [vmem:[%s1] sm:$0xf]
    %v52 = vld [vmem:[%s1 + $0x4] sm:$0xf]
    %v53 = vld [vmem:[%s2] sm:$0x1]
    %v55 = vlaneseq
    %v56 = vshrl.u32 %v55, 7
    %v57 = vsub.s32 0, %v56
    %v58 = vrot.slane %v53, %v57
    %v62 = vunpack.c.l.b16 %v51
    %v63 = vunpack.c.l.b16 %v52
    %v64 = vpack.c.b16 %v63, %v62
    %vm66 = vcmask 130048
    %v68 = vsel %vm66, %v48, 0
    %v71 = vsel %vm66, %v49, 0
    %v74 = vsel %vm66, %v50, 0
    %76 = vmatprep.subr.bf16.mxu0 0
    %77 = vmatpush1.bf16.msra.mxu0 %v64
    %78 = vmatprep.subr.bf16.mxu0 0
    %79 = vmatpush1.bf16.msra.mxu0 0
    %80 = vmatprep.subr.bf16.mxu0 0
    %81 = vmatpush1.bf16.msra.mxu0 0
    %82 = vmatprep.subr.bf16.mxu0 0
    %83 = vmatpush1.bf16.msra.mxu0 0
    %84 = vmatprep.subr.bf16.mxu0 0
    %85 = vmatpush1.bf16.msra.mxu0 0
    %86 = vmatprep.subr.bf16.mxu0 0
    %87 = vmatpush1.bf16.msra.mxu0 0
    %88 = vmatprep.subr.bf16.mxu0 0
    %89 = vmatpush1.bf16.msra.mxu0 0
    %90 = vmatprep.subr.bf16.mxu0 0
    %91 = vmatpush1.bf16.msra.mxu0 0
    %92 = vmatprep.subr.bf16.mxu0 0
    %93 = vmatpush1.bf16.msra.mxu0 0
    %94 = vmatprep.subr.bf16.mxu0 0
    %95 = vmatpush1.bf16.msra.mxu0 0
    %96 = vmatprep.subr.bf16.mxu0 0
    %97 = vmatpush1.bf16.msra.mxu0 0
    %98 = vmatprep.subr.bf16.mxu0 0
    %99 = vmatpush1.bf16.msra.mxu0 0
    %100 = vmatprep.subr.bf16.mxu0 0
    %101 = vmatpush1.bf16.msra.mxu0 0
    %102 = vmatprep.subr.bf16.mxu0 0
    %103 = vmatpush1.bf16.msra.mxu0 0
    %104 = vmatprep.subr.bf16.mxu0 0
    %105 = vmatpush1.bf16.msra.mxu0 0
    %106 = vmatprep.subr.bf16.mxu0 0
    %107 = vmatpush1.bf16.msra.mxu0 0
    %108 = vmatprep.mubr.bf16.mxu0 0
    %109 = vmatmul.mubr.bf16.gmra.mrb[0].mxu0 %v68
    %v110 = vpop.f32.mrb[0].mxu0
    %v111 = vadd.f32 %v58, %v110
    %v112 = vpop.f32.mrb[0].mxu0
    %v113 = vpop.f32.mrb[0].mxu0
    %v114 = vadd.f32 %v58, %v113
    %v115 = vpop.f32.mrb[0].mxu0
    %116 = vmatprep.mubr.bf16.mxu0 0
    %117 = vmatmul.mubr.bf16.gmra.mrb[0].mxu0 %v71
    %v118 = vpop.f32.mrb[0].mxu0
    %v119 = vadd.f32 %v58, %v118
    %v120 = vpop.f32.mrb[0].mxu0
    %v121 = vpop.f32.mrb[0].mxu0
    %v122 = vadd.f32 %v58, %v121
    %v123 = vpop.f32.mrb[0].mxu0
    %124 = vmatprep.mubr.bf16.mxu0 0
    %125 = vmatmul.mubr.bf16.gmra.mrb[0].mxu0 %v74
    %v126 = vpop.f32.mrb[0].mxu0
    %v127 = vadd.f32 %v58, %v126
    %v128 = vpop.f32.mrb[0].mxu0
    %v129 = vpop.f32.mrb[0].mxu0
    %v130 = vadd.f32 %v58, %v129
    %v131 = vpop.f32.mrb[0].mxu0
    %132 = vdwg.mxu0
    %v133 = vmax.f32 %v111, 0.0
    %v134 = vmax.f32 %v114, 0.0
    %v135 = vmax.f32 %v119, 0.0
    %v136 = vmax.f32 %v122, 0.0
    %v137 = vmax.f32 %v127, 0.0
    %v138 = vmax.f32 %v130, 0.0
    %v139 = vpack.c.bf16 %v134, %v133
    %v140 = vpack.c.bf16 %v136, %v135
    %v141 = vpack.c.bf16 %v138, %v137
    %v142 = vld [vmem:[%s3] sm:$0xf]
    %v143 = vld [vmem:[%s3 + $0x4] sm:$0xf]
    %v144 = vld [vmem:[%s3 + $0x8] sm:$0xf]
    %v145 = vld [vmem:[%s3 + $0xc] sm:$0xf]
    %v146 = vld [vmem:[%s3 + $0x10] sm:$0xf]
    %v147 = vld [vmem:[%s3 + $0x14] sm:$0xf]
    %v148 = vld [vmem:[%s3 + $0x18] sm:$0xf]
    %v149 = vld [vmem:[%s3 + $0x1c] sm:$0xf]
    %v150 = vld [vmem:[%s3 + $0x20] sm:$0xf]
    %v151 = vld [vmem:[%s3 + $0x24] sm:$0xf]
    %v152 = vld [vmem:[%s3 + $0x28] sm:$0xf]
    %v153 = vld [vmem:[%s3 + $0x2c] sm:$0xf]
    %v154 = vld [vmem:[%s3 + $0x30] sm:$0xf]
    %v155 = vld [vmem:[%s3 + $0x34] sm:$0xf]
    %v156 = vld [vmem:[%s3 + $0x38] sm:$0xf]
    %v157 = vld [vmem:[%s3 + $0x3c] sm:$0xf]
    %v158 = vld [vmem:[%s4] sm:$0x1]
    %v160 = vlaneseq
    %v161 = vshrl.u32 %v160, 7
    %v162 = vsub.s32 0, %v161
    %v163 = vrot.slane %v158, %v162
    %v181 = vunpack.c.l.b16 %v142
    %v182 = vunpack.c.l.b16 %v143
    %v183 = vunpack.c.l.b16 %v144
    %v184 = vunpack.c.l.b16 %v145
    %v185 = vunpack.c.l.b16 %v146
    %v186 = vunpack.c.l.b16 %v147
    %v187 = vunpack.c.l.b16 %v148
    %v188 = vunpack.c.l.b16 %v149
    %v189 = vunpack.c.l.b16 %v150
    %v190 = vunpack.c.l.b16 %v151
    %v191 = vunpack.c.l.b16 %v152
    %v192 = vunpack.c.l.b16 %v153
    %v193 = vunpack.c.l.b16 %v154
    %v194 = vunpack.c.l.b16 %v155
    %v195 = vunpack.c.l.b16 %v156
    %v196 = vunpack.c.l.b16 %v157
    %v197 = vpack.c.b16 %v182, %v181
    %v198 = vpack.c.b16 %v184, %v183
    %v199 = vpack.c.b16 %v186, %v185
    %v200 = vpack.c.b16 %v188, %v187
    %v201 = vpack.c.b16 %v190, %v189
    %v202 = vpack.c.b16 %v192, %v191
    %v203 = vpack.c.b16 %v194, %v193
    %v204 = vpack.c.b16 %v196, %v195
    %213 = vmatprep.subr.bf16.mxu0 0
    %214 = vmatpush1.bf16.msra.mxu0 %v197
    %215 = vmatprep.subr.bf16.mxu0 0
    %216 = vmatpush1.bf16.msra.mxu0 %v198
    %217 = vmatprep.subr.bf16.mxu0 0
    %218 = vmatpush1.bf16.msra.mxu0 %v199
    %219 = vmatprep.subr.bf16.mxu0 0
    %220 = vmatpush1.bf16.msra.mxu0 %v200
    %221 = vmatprep.subr.bf16.mxu0 0
    %222 = vmatpush1.bf16.msra.mxu0 %v201
    %223 = vmatprep.subr.bf16.mxu0 0
    %224 = vmatpush1.bf16.msra.mxu0 %v202
    %225 = vmatprep.subr.bf16.mxu0 0
    %226 = vmatpush1.bf16.msra.mxu0 %v203
    %227 = vmatprep.subr.bf16.mxu0 0
    %228 = vmatpush1.bf16.msra.mxu0 %v204
    %229 = vmatprep.subr.bf16.mxu0 0
    %230 = vmatpush1.bf16.msra.mxu0 0
    %231 = vmatprep.subr.bf16.mxu0 0
    %232 = vmatpush1.bf16.msra.mxu0 0
    %233 = vmatprep.subr.bf16.mxu0 0
    %234 = vmatpush1.bf16.msra.mxu0 0
    %235 = vmatprep.subr.bf16.mxu0 0
    %236 = vmatpush1.bf16.msra.mxu0 0
    %237 = vmatprep.subr.bf16.mxu0 0
    %238 = vmatpush1.bf16.msra.mxu0 0
    %239 = vmatprep.subr.bf16.mxu0 0
    %240 = vmatpush1.bf16.msra.mxu0 0
    %241 = vmatprep.subr.bf16.mxu0 0
    %242 = vmatpush1.bf16.msra.mxu0 0
    %243 = vmatprep.subr.bf16.mxu0 0
    %244 = vmatpush1.bf16.msra.mxu0 0
    %245 = vmatprep.mubr.bf16.mxu0 0
    %246 = vmatmul.mubr.bf16.gmra.mrb[0].mxu0 %v139
    %v247 = vpop.f32.mrb[0].mxu0
    %v248 = vadd.f32 %v163, %v247
    %v249 = vpop.f32.mrb[0].mxu0
    %v250 = vpop.f32.mrb[0].mxu0
    %v251 = vadd.f32 %v163, %v250
    %v252 = vpop.f32.mrb[0].mxu0
    %253 = vmatprep.mubr.bf16.mxu0 0
    %254 = vmatmul.mubr.bf16.gmra.mrb[0].mxu0 %v140
    %v255 = vpop.f32.mrb[0].mxu0
    %v256 = vadd.f32 %v163, %v255
    %v257 = vpop.f32.mrb[0].mxu0
    %v258 = vpop.f32.mrb[0].mxu0
    %v259 = vadd.f32 %v163, %v258
    %v260 = vpop.f32.mrb[0].mxu0
    %261 = vmatprep.mubr.bf16.mxu0 0
    %262 = vmatmul.mubr.bf16.gmra.mrb[0].mxu0 %v141
    %v263 = vpop.f32.mrb[0].mxu0
    %v264 = vadd.f32 %v163, %v263
    %v265 = vpop.f32.mrb[0].mxu0
    %v266 = vpop.f32.mrb[0].mxu0
    %v267 = vadd.f32 %v163, %v266
    %v268 = vpop.f32.mrb[0].mxu0
    %269 = vdwg.mxu0
    %v270 = vmax.f32 %v248, 0.0
    %v271 = vmax.f32 %v251, 0.0
    %v272 = vmax.f32 %v256, 0.0
    %v273 = vmax.f32 %v259, 0.0
    %v274 = vmax.f32 %v264, 0.0
    %v275 = vmax.f32 %v267, 0.0
    %v276 = vpack.c.bf16 %v271, %v270
    %v277 = vpack.c.bf16 %v273, %v272
    %v278 = vpack.c.bf16 %v275, %v274
    %v279 = vld [vmem:[#allocation2] sm:$0xf]
    %v280 = vld [vmem:[#allocation2 + $0x4] sm:$0xf]
    %v281 = vld [vmem:[#allocation2 + $0x8] sm:$0xf]
    %v282 = vld [vmem:[#allocation2 + $0xc] sm:$0xf]
    %v283 = vld [vmem:[#allocation2 + $0x10] sm:$0xf]
    %v284 = vld [vmem:[#allocation2 + $0x14] sm:$0xf]
    %v285 = vld [vmem:[#allocation2 + $0x18] sm:$0xf]
    %v286 = vld [vmem:[#allocation2 + $0x1c] sm:$0xf]
    %v287 = vld [vmem:[#allocation2 + $0x20] sm:$0xf]
    %v288 = vld [vmem:[#allocation2 + $0x24] sm:$0xf]
    %v289 = vld [vmem:[#allocation2 + $0x28] sm:$0xf]
    %v290 = vld [vmem:[#allocation2 + $0x2c] sm:$0xf]
    %v291 = vld [vmem:[#allocation2 + $0x30] sm:$0xf]
    %v292 = vld [vmem:[#allocation2 + $0x34] sm:$0xf]
    %v293 = vld [vmem:[#allocation2 + $0x38] sm:$0xf]
    %v294 = vld [vmem:[#allocation2 + $0x3c] sm:$0xf]
    %v295 = vld [vmem:[%s6] sm:$0x1]
    %v297 = vlaneseq
    %v298 = vshrl.u32 %v297, 7
    %v299 = vsub.s32 0, %v298
    %v300 = vrot.slane %v295, %v299
    %v318 = vunpack.c.l.b16 %v279
    %v319 = vunpack.c.l.b16 %v280
    %v320 = vunpack.c.l.b16 %v281
    %v321 = vunpack.c.l.b16 %v282
    %v322 = vunpack.c.l.b16 %v283
    %v323 = vunpack.c.l.b16 %v284
    %v324 = vunpack.c.l.b16 %v285
    %v325 = vunpack.c.l.b16 %v286
    %v326 = vunpack.c.l.b16 %v287
    %v327 = vunpack.c.l.b16 %v288
    %v328 = vunpack.c.l.b16 %v289
    %v329 = vunpack.c.l.b16 %v290
    %v330 = vunpack.c.l.b16 %v291
    %v331 = vunpack.c.l.b16 %v292
    %v332 = vunpack.c.l.b16 %v293
    %v333 = vunpack.c.l.b16 %v294
    %v334 = vpack.c.b16 %v319, %v318
    %v335 = vpack.c.b16 %v321, %v320
    %v336 = vpack.c.b16 %v323, %v322
    %v337 = vpack.c.b16 %v325, %v324
    %v338 = vpack.c.b16 %v327, %v326
    %v339 = vpack.c.b16 %v329, %v328
    %v340 = vpack.c.b16 %v331, %v330
    %v341 = vpack.c.b16 %v333, %v332
    %350 = vmatprep.subr.bf16.mxu0 0
    %351 = vmatpush1.bf16.msra.mxu0 %v334
    %352 = vmatprep.subr.bf16.mxu0 0
    %353 = vmatpush1.bf16.msra.mxu0 %v335
    %354 = vmatprep.subr.bf16.mxu0 0
    %355 = vmatpush1.bf16.msra.mxu0 %v336
    %356 = vmatprep.subr.bf16.mxu0 0
    %357 = vmatpush1.bf16.msra.mxu0 %v337
    %358 = vmatprep.subr.bf16.mxu0 0
    %359 = vmatpush1.bf16.msra.mxu0 %v338
    %360 = vmatprep.subr.bf16.mxu0 0
    %361 = vmatpush1.bf16.msra.mxu0 %v339
    %362 = vmatprep.subr.bf16.mxu0 0
    %363 = vmatpush1.bf16.msra.mxu0 %v340
    %364 = vmatprep.subr.bf16.mxu0 0
    %365 = vmatpush1.bf16.msra.mxu0 %v341
    %366 = vmatprep.subr.bf16.mxu0 0
    %367 = vmatpush1.bf16.msra.mxu0 0
    %368 = vmatprep.subr.bf16.mxu0 0
    %369 = vmatpush1.bf16.msra.mxu0 0
    %370 = vmatprep.subr.bf16.mxu0 0
    %371 = vmatpush1.bf16.msra.mxu0 0
    %372 = vmatprep.subr.bf16.mxu0 0
    %373 = vmatpush1.bf16.msra.mxu0 0
    %374 = vmatprep.subr.bf16.mxu0 0
    %375 = vmatpush1.bf16.msra.mxu0 0
    %376 = vmatprep.subr.bf16.mxu0 0
    %377 = vmatpush1.bf16.msra.mxu0 0
    %378 = vmatprep.subr.bf16.mxu0 0
    %379 = vmatpush1.bf16.msra.mxu0 0
    %380 = vmatprep.subr.bf16.mxu0 0
    %381 = vmatpush1.bf16.msra.mxu0 0
    %382 = vmatprep.mubr.bf16.mxu0 0
    %383 = vmatmul.mubr.bf16.gmra.mrb[0].mxu0 %v276
    %v384 = vpop.f32.mrb[0].mxu0
    %v385 = vadd.f32 %v300, %v384
    %v386 = vpop.f32.mrb[0].mxu0
    %v387 = vpop.f32.mrb[0].mxu0
    %v388 = vadd.f32 %v300, %v387
    %v389 = vpop.f32.mrb[0].mxu0
    %390 = vmatprep.mubr.bf16.mxu0 0
    %391 = vmatmul.mubr.bf16.gmra.mrb[0].mxu0 %v277
    %v392 = vpop.f32.mrb[0].mxu0
    %v393 = vadd.f32 %v300, %v392
    %v394 = vpop.f32.mrb[0].mxu0
    %v395 = vpop.f32.mrb[0].mxu0
    %v396 = vadd.f32 %v300, %v395
    %v397 = vpop.f32.mrb[0].mxu0
    %398 = vmatprep.mubr.bf16.mxu0 0
    %399 = vmatmul.mubr.bf16.gmra.mrb[0].mxu0 %v278
    %v400 = vpop.f32.mrb[0].mxu0
    %v401 = vadd.f32 %v300, %v400
    %v402 = vpop.f32.mrb[0].mxu0
    %v403 = vpop.f32.mrb[0].mxu0
    %v404 = vadd.f32 %v300, %v403
    %v405 = vpop.f32.mrb[0].mxu0
    %406 = vdwg.mxu0
    %v407 = vlaneseq
    %v408 = vand.u32 %v407, 127
    %vm409 = vcmp.lt.s32.totalorder %v408, 4
    %v410 = vsel %vm409, %v385, -1e+30
    %v411 = vsel %vm409, %v388, -1e+30
    %v412 = vsel %vm409, %v393, -1e+30
    %v413 = vsel %vm409, %v396, -1e+30
    %v414 = vsel %vm409, %v401, -1e+30
    %v415 = vsel %vm409, %v404, -1e+30
    %416 = vmax.xlane.f32.xlu0 %v410
    %v417 = vpop.xlane.xlu0 %416
    %418 = vmax.xlane.f32.xlu0 %v411
    %v419 = vpop.xlane.xlu0 %418
    %420 = vmax.xlane.f32.xlu0 %v412
    %v421 = vpop.xlane.xlu0 %420
    %422 = vmax.xlane.f32.xlu0 %v413
    %v423 = vpop.xlane.xlu0 %422
    %424 = vmax.xlane.f32.xlu0 %v414
    %v425 = vpop.xlane.xlu0 %424
    %426 = vmax.xlane.f32.xlu0 %v415
    %v427 = vpop.xlane.xlu0 %426
    %v428 = vsub.f32 %v410, %v417
    %v429 = vsub.f32 %v411, %v419
    %v430 = vsub.f32 %v412, %v421
    %v431 = vsub.f32 %v413, %v423
    %v432 = vsub.f32 %v414, %v425
    %v433 = vsub.f32 %v415, %v427
    %v434 = vmul.f32 %v428, 1.442695
    %v435 = vpow.pop %v434
    %v436 = vmul.f32 %v429, 1.442695
    %v437 = vpow.pop %v436
    %v438 = vmul.f32 %v430, 1.442695
    %v439 = vpow.pop %v438
    %v440 = vmul.f32 %v431, 1.442695
    %v441 = vpow.pop %v440
    %v442 = vmul.f32 %v432, 1.442695
    %v443 = vpow.pop %v442
    %v444 = vmul.f32 %v433, 1.442695
    %v445 = vpow.pop %v444
    %446 = vadd.xlane.f32.xlu0 %v435
    %v447 = vpop.xlane.xlu0 %446
    %448 = vadd.xlane.f32.xlu0 %v437
    %v449 = vpop.xlane.xlu0 %448
    %450 = vadd.xlane.f32.xlu0 %v439
    %v451 = vpop.xlane.xlu0 %450
    %452 = vadd.xlane.f32.xlu0 %v441
    %v453 = vpop.xlane.xlu0 %452
    %454 = vadd.xlane.f32.xlu0 %v443
    %v455 = vpop.xlane.xlu0 %454
    %456 = vadd.xlane.f32.xlu0 %v445
    %v457 = vpop.xlane.xlu0 %456
    %v458 = vrcp.pop %v447
    %v459 = vmul.f32 %v435, %v458
    %v460 = vrcp.pop %v449
    %v461 = vmul.f32 %v437, %v460
    %v462 = vrcp.pop %v451
    %v463 = vmul.f32 %v439, %v462
    %v464 = vrcp.pop %v453
    %v465 = vmul.f32 %v441, %v464
    %v466 = vrcp.pop %v455
    %v467 = vmul.f32 %v443, %v466
    %v468 = vrcp.pop %v457
    %v469 = vmul.f32 %v445, %v468
    %v470 = vpack.c.bf16 %v461, %v459
    %v471 = vpack.c.bf16 %v465, %v463
    %v472 = vpack.c.bf16 %v469, %v467
    %v476 = vunpack.c.l.b16 %v470
    %v477 = vunpack.c.h.b16 %v470
    %v478 = vunpack.c.l.b16 %v471
    %v479 = vunpack.c.h.b16 %v471
    %v480 = vunpack.c.l.b16 %v472
    %v481 = vunpack.c.h.b16 %v472
    %v482 = vpack.c.b16 %v476, %v476
    %v483 = vpack.c.b16 %v477, %v477
    %v484 = vpack.c.b16 %v478, %v478
    %v485 = vpack.c.b16 %v479, %v479
    %v486 = vpack.c.b16 %v480, %v480
    %v487 = vpack.c.b16 %v481, %v481
    %494 = vst [vmem:[#allocation5] sm:$0xf] %v482
    %495 = vst [vmem:[#allocation5 + $0x4] sm:$0xf] %v483
    %496 = vst [vmem:[#allocation5 + $0x8] sm:$0xf] %v484
    %497 = vst [vmem:[#allocation5 + $0xc] sm:$0xf] %v485
    %498 = vst [vmem:[#allocation5 + $0x10] sm:$0xf] %v486
    %499 = vst [vmem:[#allocation5 + $0x14] sm:$0xf] %v487
    // Predicated region
    $region34: #{tpu_custom_call.1} parent=1 // pred_check
      _
    $region35: #{tpu_custom_call.1} parent=1 // pred_check_branch
      %501 = sbr.rel (0) target = $region37
    $region36: #{tpu_custom_call.1} parent=1 // pred_region
      %s503 = ssub.s32 384, 384
      %504 = vsyncadd [#allocation4], %s503
      %s505 = sshll.u32 [#allocation5], 4
      %s506 = int_to_ptr.vmem [resolvable:$true] %s505
      %511 = dma.vmem_to_hbm [thread:$0]  %s506, 384, %s7, [#allocation4], 64, 64, 4
    $region37: #{tpu_custom_call.1} parent=1 // pred_fallthru
      _
    // Predicated region
    $region38: #{tpu_custom_call.1} parent=1 // pred_check
      _
    $region39: #{tpu_custom_call.1} parent=1 // pred_check_branch
      %513 = sbr.rel (0) target = $region41
    $region40: #{tpu_custom_call.1} parent=1 // pred_region
      %514 = dma.done [#allocation4], 384
    $region41: #{tpu_custom_call.1} parent=1 // pred_fallthru
      _
    %515 = vsyncpa [#allocation3], 1
    %516 = vsyncpa [#allocation4], 1

</llo_original>
